<compile_context>
chip_gen: v7x
topology: tpu7x:2x2x1
jax: 0.10.0
libtpu: 0.0.40
codegen_flags: <defaults>
</compile_context>

<pallas_src>
import jax
import jax.numpy as jnp
import numpy as np
from jax.experimental import pallas as pl
from jax.experimental.pallas import tpu as pltpu


def _cdiv(a: int, b: int) -> int:
    return -(-a // b)


def _round_up(x: int, m: int) -> int:
    return _cdiv(x, m) * m


def _vmem_budgets():
    """(tile_budget_bytes, vmem_limit_bytes) — generation aware, safe fallback."""
    phys = 64 << 20  # conservative default = v7x per-core VMEM
    try:
        phys = int(pltpu.get_tpu_info().vmem_capacity_bytes)
    except Exception:
        pass
    tile_budget = min((phys * 5) // 8, 96 << 20)          # ~40 MiB v7x, ~80 MiB v5e/v6e
    vmem_limit = min(tile_budget + (8 << 20), phys - (8 << 20))
    return int(tile_budget), int(vmem_limit)


def _make_kernel(C: int, HW: int, i: int, N: int, TN: int, needs_row_mask: bool):
    # Only Python ints/bools are captured -> no "captures constants" error.
    def kernel(pred_ref, mask_ref, num_ref, cnt_ref):
        def ch(c):  # static lane slice of the ref (offsets are multiples of HW)
            return pred_ref[:, c * HW:(c + 1) * HW].astype(jnp.float32)

        # signed = pred_i - sum_{c != i} pred_c  (sign & scaling applied in JAX)
        signed = ch(i)
        for c in range(C):
            if c != i:
                signed = signed - ch(c)

        sel = mask_ref[...] != 0                                   # (TN, HW) bool
        if needs_row_mask:
            # Ragged last block: rows >= N contain garbage -> drop them.
            row = (jax.lax.broadcasted_iota(jnp.int32, (TN, HW), 0)
                   + pl.program_id(0) * TN)
            sel = jnp.logical_and(sel, row < N)

        # jnp.where (not multiply) so garbage (possibly NaN/Inf) rows vanish.
        num = jnp.sum(jnp.where(sel, signed, 0.0))
        cnt = jnp.sum(sel.astype(jnp.float32))

        num_ref[...] = num.astype(jnp.float32).reshape(1, 1, 1)
        cnt_ref[...] = cnt.astype(jnp.float32).reshape(1, 1, 1)

    return kernel


def wasserstein_loss_with_masking(pred, i, mask, scaling=None, *, d_train=True):
    """pred: (b*Nc, C, h, w) f32/bf16; mask: (b, Nc, h, w) bool; i: Python int
    (compile-time channel index). scaling may be a Python number or traced scalar."""
    N, C, h, w = pred.shape
    b, Nc, hh, ww = mask.shape
    assert N == b * Nc and (hh, ww) == (h, w)
    HW = h * w

    # Flattened, lane-dense views. No dtype cast of pred, no jnp.pad.
    pred2 = pred.reshape(N, C * HW)                  # keep producer dtype (bf16 ok)
    mask2 = mask.reshape(N, HW).astype(jnp.int8)     # 1 byte/elem of HBM traffic

    itemsize = jnp.dtype(pred.dtype).itemsize
    tile_budget, vmem_limit = _vmem_budgets()

    # Per-row VMEM cost of one grid step: double-buffered pred+mask blocks plus
    # headroom for the elementwise temporaries (signed / sel / iota / where).
    row_bytes = 2 * (C * HW * itemsize + HW) + 6 * HW * 4
    small_input = N * (C * HW * itemsize + HW) <= (4 << 20)

    if (small_input or N <= 32) and N * row_bytes <= tile_budget:
        TN = N                        # single block; TN == full dim is rule-exempt
    else:
        SUB = 32                      # row alignment valid for f32 / bf16 / int8 packing
        cap = max(SUB, (tile_budget // row_bytes // SUB) * SUB)
        target = max(SUB, _round_up(_cdiv(N, 4), SUB))   # >= ~4 steps for DMA overlap
        TN = min(cap, target, _round_up(N, SUB))
    # TODO(synk): for very large h*w (single row of C*HW exceeding the VMEM budget),
    # add a second (lane) grid axis instead of relying on one row tile.
    grid = _cdiv(N, TN)
    needs_row_mask = (N % TN) != 0

    kernel = _make_kernel(C, HW, int(i), N, TN, needs_row_mask)

    num_parts, cnt_parts = pl.pallas_call(
        kernel,
        out_shape=(jax.ShapeDtypeStruct((grid, 1, 1), jnp.float32),
                   jax.ShapeDtypeStruct((grid, 1, 1), jnp.float32)),
        grid_spec=pltpu.PrefetchScalarGridSpec(
            num_scalar_prefetch=0,
            grid=(grid,),
            in_specs=[
                pl.BlockSpec((TN, C * HW), lambda t: (t, 0)),
                pl.BlockSpec((TN, HW), lambda t: (t, 0)),
            ],
            out_specs=(
                pl.BlockSpec((1, 1, 1), lambda t: (t, 0, 0)),
                pl.BlockSpec((1, 1, 1), lambda t: (t, 0, 0)),
            ),
        ),
        compiler_params=pltpu.CompilerParams(
            dimension_semantics=("parallel",),    # lets both v7x TCs stream HBM
            vmem_limit_bytes=vmem_limit,
        ),
    )(pred2, mask2)

    num = jnp.sum(num_parts)
    cnt = jnp.sum(cnt_parts)
    sign = 1.0 if d_train else -1.0
    scale = 1.0 if scaling is None else scaling
    # NOTE: all-False mask -> division by zero, matching torch.mean of empty selection.
    return (sign * scale) * num / (C * cnt)


def _reference(pred, i, mask, scaling, d_train):
    pred = jnp.asarray(pred, jnp.float32)
    if scaling is not None:
        pred = pred * scaling
    if not d_train:
        pred = pred.at[:, i].multiply(-1.0)
    else:
        pred = pred * -1.0
        pred = pred.at[:, i].multiply(-1.0)
    b, Nc, h, w = mask.shape
    C = pred.shape[1]
    m = jnp.broadcast_to(mask.reshape(b * Nc, 1, h, w), (b * Nc, C, h, w))
    mf = m.astype(jnp.float32)
    return jnp.sum(pred * mf) / jnp.sum(mf)


if __name__ == "__main__":
    key = jax.random.PRNGKey(0)
    kp, km = jax.random.split(key)

    b, Nc, h, w = 2, 4, 16, 16
    C = 3  # len(MODEL.VALID_SCALE)

    pred = jax.random.normal(kp, (b * Nc, C, h, w), dtype=jnp.float32)
    mask = jax.random.uniform(km, (b, Nc, h, w)) > 0.5  # bool, ~50% true

    i, scaling = 1, 1.25

    # d_train=True path.
    loss = jax.block_until_ready(
        wasserstein_loss_with_masking(pred, i, mask, scaling, d_train=True))
    ref = jax.block_until_ready(_reference(pred, i, mask, scaling, True))
    np.testing.assert_allclose(np.asarray(loss), np.asarray(ref), rtol=1e-4, atol=1e-5)

    # d_train=False path.
    loss2 = jax.block_until_ready(
        wasserstein_loss_with_masking(pred, i, mask, scaling, d_train=False))
    ref2 = jax.block_until_ready(_reference(pred, i, mask, scaling, False))
    np.testing.assert_allclose(np.asarray(loss2), np.asarray(ref2), rtol=1e-4, atol=1e-5)

    # bf16 pred straight into the kernel (halved HBM reads; upcast happens in-kernel).
    pred_bf = pred.astype(jnp.bfloat16)
    loss3 = jax.block_until_ready(
        wasserstein_loss_with_masking(pred_bf, i, mask, scaling, d_train=True))
    ref3 = jax.block_until_ready(_reference(pred_bf, i, mask, scaling, True))
    np.testing.assert_allclose(np.asarray(loss3), np.asarray(ref3), rtol=1e-3, atol=1e-4)

    # Larger, ragged row count: exercises the multi-step "parallel" grid and the
    # in-kernel row-validity mask (no wrapper-side jnp.pad anywhere).
    b2, Nc2 = 2, 700  # N = 1400, not a multiple of the chosen row tile
    kp2, km2 = jax.random.split(jax.random.PRNGKey(1))
    pred_r = jax.random.normal(kp2, (b2 * Nc2, C, h, w), dtype=jnp.float32)
    mask_r = jax.random.uniform(km2, (b2, Nc2, h, w)) > 0.5
    loss4 = jax.block_until_ready(
        wasserstein_loss_with_masking(pred_r, 2, mask_r, None, d_train=False))
    ref4 = jax.block_until_ready(_reference(pred_r, 2, mask_r, None, False))
    np.testing.assert_allclose(np.asarray(loss4), np.asarray(ref4), rtol=1e-4, atol=1e-4)

    print("KERNEL_OK")
</pallas_src>

<mosaic_0001>
module attributes {stable_mosaic.version = 11 : i64} {
  func.func @kernel(%arg0: i32, %arg1: memref<8x768xf32, #tpu.memory_space<vmem>>, %arg2: memref<8x256xi8, #tpu.memory_space<vmem>>, %arg3: memref<1x1x1xf32, #tpu.memory_space<vmem>>, %arg4: memref<1x1x1xf32, #tpu.memory_space<vmem>>) attributes {dimension_semantics = [#tpu.dimension_semantics<parallel>], iteration_bounds = array<i64: 1>, scalar_prefetch = 0 : i64, scratch_operands = 0 : i64, tpu.core_type = #tpu.core_type<tc>, window_params = [{transform_indices = @transform_0, window_bounds = array<i64: 8, 768>}, {transform_indices = @transform_1, window_bounds = array<i64: 8, 256>}, {transform_indices = @transform_2, window_bounds = array<i64: 1, 1, 1>}, {transform_indices = @transform_3, window_bounds = array<i64: 1, 1, 1>}]} {
    %c0 = arith.constant 0 : index
    %c256 = arith.constant 256 : index
    %0 = vector.load %arg1[%c0, %c256] : memref<8x768xf32, #tpu.memory_space<vmem>>, vector<8x256xf32>
    %c0_0 = arith.constant 0 : index
    %c0_1 = arith.constant 0 : index
    %1 = vector.load %arg1[%c0_0, %c0_1] : memref<8x768xf32, #tpu.memory_space<vmem>>, vector<8x256xf32>
    %2 = arith.subf %0, %1 : vector<8x256xf32>
    %c0_2 = arith.constant 0 : index
    %c512 = arith.constant 512 : index
    %3 = vector.load %arg1[%c0_2, %c512] : memref<8x768xf32, #tpu.memory_space<vmem>>, vector<8x256xf32>
    %4 = arith.subf %2, %3 : vector<8x256xf32>
    %c0_3 = arith.constant 0 : index
    %c0_4 = arith.constant 0 : index
    %5 = vector.load %arg2[%c0_3, %c0_4] : memref<8x256xi8, #tpu.memory_space<vmem>>, vector<8x256xi8>
    %c0_i8 = arith.constant 0 : i8
    %6 = vector.broadcast %c0_i8 : i8 to vector<8x256xi8>
    %7 = arith.cmpi ne, %5, %6 : vector<8x256xi8>
    %cst = arith.constant 0.000000e+00 : f32
    %8 = vector.broadcast %cst : f32 to vector<8x256xf32>
    %9 = arith.select %7, %4, %8 : vector<8x256xi1>, vector<8x256xf32>
    %10 = vector.shape_cast %9 : vector<8x256xf32> to vector<1x8x256xf32>
    %cst_5 = arith.constant dense<0.000000e+00> : vector<1xf32>
    %11 = vector.multi_reduction <add>, %10, %cst_5 [1, 2] : vector<1x8x256xf32> to vector<1xf32>
    %12 = vector.shape_cast %11 : vector<1xf32> to vector<1x1x1xf32>
    %13 = vector.extract %12[0, 0, 0] : f32 from vector<1x1x1xf32>
    %14 = arith.extui %7 : vector<8x256xi1> to vector<8x256xi32>
    %15 = arith.sitofp %14 : vector<8x256xi32> to vector<8x256xf32>
    %16 = vector.shape_cast %15 : vector<8x256xf32> to vector<1x8x256xf32>
    %cst_6 = arith.constant dense<0.000000e+00> : vector<1xf32>
    %17 = vector.multi_reduction <add>, %16, %cst_6 [1, 2] : vector<1x8x256xf32> to vector<1xf32>
    %18 = vector.shape_cast %17 : vector<1xf32> to vector<1x1x1xf32>
    %19 = vector.extract %18[0, 0, 0] : f32 from vector<1x1x1xf32>
    %20 = vector.broadcast %13 : f32 to vector<1x1x1xf32>
    %c0_7 = arith.constant 0 : index
    %c0_8 = arith.constant 0 : index
    %c0_9 = arith.constant 0 : index
    %21 = vector.load %arg3[%c0_7, %c0_8, %c0_9] : memref<1x1x1xf32, #tpu.memory_space<vmem>>, vector<1x1x1xf32>
    tpu.vector_store %arg3[%c0_7, %c0_8, %c0_9], %20 {strides = array<i32>} : memref<1x1x1xf32, #tpu.memory_space<vmem>>, vector<1x1x1xf32>,
    %22 = vector.broadcast %19 : f32 to vector<1x1x1xf32>
    %c0_10 = arith.constant 0 : index
    %c0_11 = arith.constant 0 : index
    %c0_12 = arith.constant 0 : index
    %23 = vector.load %arg4[%c0_10, %c0_11, %c0_12] : memref<1x1x1xf32, #tpu.memory_space<vmem>>, vector<1x1x1xf32>
    tpu.vector_store %arg4[%c0_10, %c0_11, %c0_12], %22 {strides = array<i32>} : memref<1x1x1xf32, #tpu.memory_space<vmem>>, vector<1x1x1xf32>,
    return
  }
  func.func @transform_0(%arg0: i32) -> (i32, i32) {
    %c0_i32 = arith.constant 0 : i32
    %c0_i32_0 = arith.constant 0 : i32
    return %arg0, %c0_i32 : i32, i32
  }
  func.func @transform_1(%arg0: i32) -> (i32, i32) {
    %c0_i32 = arith.constant 0 : i32
    %c0_i32_0 = arith.constant 0 : i32
    return %arg0, %c0_i32 : i32, i32
  }
  func.func @transform_2(%arg0: i32) -> (i32, i32, i32) {
    %c0_i32 = arith.constant 0 : i32
    %c0_i32_0 = arith.constant 0 : i32
    %c0_i32_1 = arith.constant 0 : i32
    return %arg0, %c0_i32, %c0_i32_0 : i32, i32, i32
  }
  func.func @transform_3(%arg0: i32) -> (i32, i32, i32) {
    %c0_i32 = arith.constant 0 : i32
    %c0_i32_0 = arith.constant 0 : i32
    %c0_i32_1 = arith.constant 0 : i32
    return %arg0, %c0_i32, %c0_i32_0 : i32, i32, i32
  }
}

</mosaic_0001>

<llo_original>
// kernel: tpu_custom_call.1
$region0: #{tpu_custom_call.1}
  #allocation0 [shape = 'u32[]', space=smem, size = 0x4, offset = 0x4, fixed_abs, tag = 'smem constant byte address 0x4 - core index']
  #allocation1 [shape = 'u32[144,128]{1,0:T(1,128)}', space=vmem, size = 0x12000, scoped, tag = 'internal scratch']
  %s0 = inlined_call_operand.hbm [shape: f32[8,768], index: 0, kind: input, shape index: {}]
  %s1 = inlined_call_operand.hbm [shape: s8[8,256], index: 1, kind: input, shape index: {}]
  %s2 = inlined_call_operand.hbm [shape: f32[1,1,1], index: 2, kind: output, shape index: {0}]
  %s3 = inlined_call_operand.hbm [shape: f32[1,1,1], index: 3, kind: output, shape index: {1}]
  %4 = xla_tuple %s2, %s3
  %s5 = sld [smem:[#allocation0]]
  $region34: #{tpu_custom_call.1} parent=0
    _
  %s7 = ssub.s32 1, %s5
  %s8 = scalar_select 0, %s7, %s5
  $region1: #{tpu_custom_call.1} parent=0
    #allocation2 [shape = 'u8[24576]{0}', space=vmem, size = 0x6000, scoped, tag = 'input window, operand 0, single buffered']
    #allocation3 [shape = 's32[1]{0}', space=sflag, size = 0x4, scoped, tag = 'scoped memory for tpu_custom_call.1']
    #allocation4 [shape = 's32[1]{0}', space=sflag, size = 0x4, scoped, tag = 'scoped memory for tpu_custom_call.1']
    #allocation5 [shape = 'u8[2048]{0}', space=vmem, size = 0x800, scoped, tag = 'input window, operand 1, single buffered']
    #allocation6 [shape = 's32[1]{0}', space=sflag, size = 0x4, scoped, tag = 'scoped memory for tpu_custom_call.1']
    #allocation7 [shape = 'u8[512]{0}', space=vmem, size = 0x400, scoped, tag = 'output window, operand 0, single buffered']
    #allocation8 [shape = 'u8[512]{0}', space=vmem, size = 0x400, scoped, tag = 'output window, operand 1, single buffered']
    #allocation9 [shape = 's32[1]{0}', space=sflag, size = 0x4, scoped, tag = 'scoped memory for tpu_custom_call.1']
    %9 = vsyncpa [#allocation3], 0
    %10 = vsyncpa [#allocation6], 0
    %11 = vsyncpa [#allocation4], 0
    %12 = vsyncpa [#allocation9], 0
    // Predicated region
    $region2: #{tpu_custom_call.1} parent=1 // pred_check
      _
    $region3: #{tpu_custom_call.1} parent=1 // pred_check_branch
      %14 = sbr.rel (0) target = $region5
    $region4: #{tpu_custom_call.1} parent=1 // pred_region
      %s16 = ssub.s32 768, 768
      %17 = vsyncadd [#allocation3], %s16
      %s19 = sshll.u32 [#allocation2], 4
      %s20 = int_to_ptr.vmem [resolvable:$true] %s19
      %22 = dma.hbm_to_vmem [thread:$0]  %s0, 768, %s20, [#allocation3]
    $region5: #{tpu_custom_call.1} parent=1 // pred_fallthru
      _
    // Predicated region
    $region6: #{tpu_custom_call.1} parent=1 // pred_check
      _
    $region7: #{tpu_custom_call.1} parent=1 // pred_check_branch
      %24 = sbr.rel (0) target = $region9
    $region8: #{tpu_custom_call.1} parent=1 // pred_region
      %s26 = ssub.s32 64, 64
      %27 = vsyncadd [#allocation6], %s26
      %s29 = sshll.u32 [#allocation5], 4
      %s30 = int_to_ptr.vmem [resolvable:$true] %s29
      %32 = dma.hbm_to_vmem [thread:$0]  %s1, 64, %s30, [#allocation6]
    $region9: #{tpu_custom_call.1} parent=1 // pred_fallthru
      _
    // Predicated region
    $region10: #{tpu_custom_call.1} parent=1 // pred_check
      _
    $region11: #{tpu_custom_call.1} parent=1 // pred_check_branch
      %34 = sbr.rel (0) target = $region13
    $region12: #{tpu_custom_call.1} parent=1 // pred_region
      %35 = dma.done [#allocation3], 768
    $region13: #{tpu_custom_call.1} parent=1 // pred_fallthru
      _
    // Predicated region
    $region14: #{tpu_custom_call.1} parent=1 // pred_check
      _
    $region15: #{tpu_custom_call.1} parent=1 // pred_check_branch
      %37 = sbr.rel (0) target = $region17
    $region16: #{tpu_custom_call.1} parent=1 // pred_region
      %38 = dma.done [#allocation6], 64
    $region17: #{tpu_custom_call.1} parent=1 // pred_fallthru
      _
    %v41 = vld [vmem:[#allocation2 + $0x10] sm:$0xff]
    %v42 = vld [vmem:[#allocation2 + $0x18] sm:$0xff]
    %v43 = vld [vmem:[#allocation2] sm:$0xff]
    %v44 = vld [vmem:[#allocation2 + $0x8] sm:$0xff]
    %v45 = vsub.f32 %v41, %v43
    %v46 = vsub.f32 %v42, %v44
    %v47 = vld [vmem:[#allocation2 + $0x20] sm:$0xff]
    %v48 = vld [vmem:[#allocation2 + $0x28] sm:$0xff]
    %v49 = vsub.f32 %v45, %v47
    %v50 = vsub.f32 %v46, %v48
    %v51 = vld [vmem:[#allocation5] sm:$0xf]
    %vm52 = vnez %v51
    %v53 = vsel %vm52, 16843009, 0
    %v54 = vunpack.c.0.s8 %v53
    %v55 = vunpack.c.1.s8 %v53
    %vm56 = vcmp.ne.s32.totalorder %v54, 0
    %vm57 = vcmp.ne.s32.totalorder %v55, 0
    %v58 = vsel %vm56, %v49, 0.0
    %v59 = vsel %vm57, %v50, 0.0
    %v60 = vadd.f32 %v58, %v59
    %61 = vadd.xlane.f32.xlu0 %v60
    %v62 = vpop.xlane.xlu0 %61
    %v63 = vrot.slane %v62, 4
    %v64 = vadd.f32 %v62, %v63
    %v65 = vrot.slane %v64, 2
    %v66 = vadd.f32 %v64, %v65
    %v67 = vrot.slane %v66, 1
    %v68 = vadd.f32 %v66, %v67
    %s69 = vtos %v68
    %v70 = vsel %vm56, 1, 0
    %v71 = vsel %vm57, 1, 0
    %v72 = vcvt.s32.f32 %v70
    %v73 = vcvt.s32.f32 %v71
    %v74 = vadd.f32 %v72, %v73
    %75 = vadd.xlane.f32.xlu0 %v74
    %v76 = vpop.xlane.xlu0 %75
    %v77 = vrot.slane %v76, 4
    %v78 = vadd.f32 %v76, %v77
    %v79 = vrot.slane %v78, 2
    %v80 = vadd.f32 %v78, %v79
    %v81 = vrot.slane %v80, 1
    %v82 = vadd.f32 %v80, %v81
    %s83 = vtos %v82
    %v84 = vstv %s69
    %vm85 = vcmask 0
    %86 = vst.msk [vmem:[#allocation7] sm:$0x1] %vm85, %v84
    %v87 = vstv %s83
    %88 = vst.msk [vmem:[#allocation8] sm:$0x1] %vm85, %v87
    // Predicated region
    $region18: #{tpu_custom_call.1} parent=1 // pred_check
      _
    $region19: #{tpu_custom_call.1} parent=1 // pred_check_branch
      %90 = sbr.rel (0) target = $region21
    $region20: #{tpu_custom_call.1} parent=1 // pred_region
      %s92 = ssub.s32 16, 16
      %93 = vsyncadd [#allocation4], %s92
      %s95 = sshll.u32 [#allocation7], 4
      %s96 = int_to_ptr.vmem [resolvable:$true] %s95
      %98 = dma.vmem_to_hbm [thread:$0]  %s96, 16, %s2, [#allocation4]
    $region21: #{tpu_custom_call.1} parent=1 // pred_fallthru
      _
    // Predicated region
    $region22: #{tpu_custom_call.1} parent=1 // pred_check
      _
    $region23: #{tpu_custom_call.1} parent=1 // pred_check_branch
      %100 = sbr.rel (0) target = $region25
    $region24: #{tpu_custom_call.1} parent=1 // pred_region
      %s102 = ssub.s32 16, 16
      %103 = vsyncadd [#allocation9], %s102
      %s105 = sshll.u32 [#allocation8], 4
      %s106 = int_to_ptr.vmem [resolvable:$true] %s105
      %108 = dma.vmem_to_hbm [thread:$0]  %s106, 16, %s3, [#allocation9]
    $region25: #{tpu_custom_call.1} parent=1 // pred_fallthru
      _
    // Predicated region
    $region26: #{tpu_custom_call.1} parent=1 // pred_check
      _
    $region27: #{tpu_custom_call.1} parent=1 // pred_check_branch
      %110 = sbr.rel (0) target = $region29
    $region28: #{tpu_custom_call.1} parent=1 // pred_region
      %111 = dma.done [#allocation4], 16
    $region29: #{tpu_custom_call.1} parent=1 // pred_fallthru
      _
    // Predicated region
    $region30: #{tpu_custom_call.1} parent=1 // pred_check
      _
    $region31: #{tpu_custom_call.1} parent=1 // pred_check_branch
      %113 = sbr.rel (0) target = $region33
    $region32: #{tpu_custom_call.1} parent=1 // pred_region
      %114 = dma.done [#allocation9], 16
    $region33: #{tpu_custom_call.1} parent=1 // pred_fallthru
      _
    %115 = vsyncpa [#allocation3], 1
    %116 = vsyncpa [#allocation6], 1
    %117 = vsyncpa [#allocation4], 1
    %118 = vsyncpa [#allocation9], 1

</llo_original>
